<compile_context>
chip_gen: v7x
topology: tpu7x:2x2x1
jax: 0.10.0
libtpu: 0.0.40
codegen_flags: <defaults>
</compile_context>

<pallas_src>
import dataclasses
import functools

import jax
import jax.numpy as jnp
from jax.experimental import pallas as pl
from jax.experimental.pallas import tpu as pltpu


def _fused_ce_kernel(act_ref, obj_ref, mask_ref, tgt_ref, out_ref, *,
                     batch_size: int, blocks_per_slice: int, need_mask: bool):
    """Fused per-block cross-entropy partial sums for action + object heads.

    act_ref:  (TB, A)  logits block
    obj_ref:  (TB, O)  logits block
    mask_ref: (TB, O)  int8 obj_mask block (nonzero => masked => logit forced 0)
    tgt_ref:  (TB, 2)  int32 targets  [:,0]=action  [:,1]=object
    out_ref:  (1, 2)   f32 per-slice accumulator [sum_ce_action, sum_ce_object]
    """
    c = pl.program_id(0)      # parallel slice (feeds both TCs on v7x)
    i = pl.program_id(1)      # reduction step within the slice

    @pl.when(i == 0)
    def _init():
        out_ref[...] = jnp.zeros_like(out_ref)

    tb, a_cls = act_ref.shape
    o_cls = obj_ref.shape[1]
    tot = a_cls + o_cls       # <= 128 -> one lane tile

    act = act_ref[...].astype(jnp.float32)
    # object_hat * ~obj_mask: masked class logits become exactly 0.
    obj = jnp.where(mask_ref[...] != 0, jnp.float32(0.0),
                    obj_ref[...].astype(jnp.float32))

    # Both heads share one lane tile from here on.
    logits = jnp.concatenate([act, obj], axis=-1)            # (tb, tot)
    lane = jax.lax.broadcasted_iota(jnp.int32, (tb, tot), 1)
    is_act = lane < a_cls

    # Per-head max, broadcast back onto the fused tile.
    m_a = jnp.max(act, axis=-1, keepdims=True)                # (tb, 1)
    m_o = jnp.max(obj, axis=-1, keepdims=True)                # (tb, 1)
    m_b = jnp.where(is_act, m_a, m_o)                         # (tb, tot)

    e = jnp.exp(logits - m_b)                                 # ONE exp pass

    sum_a = jnp.sum(jnp.where(is_act, e, 0.0), axis=-1, keepdims=True)
    sum_o = jnp.sum(jnp.where(is_act, 0.0, e), axis=-1, keepdims=True)
    # ONE log over the stacked denominators.
    logs = jnp.log(jnp.concatenate([sum_a, sum_o], axis=-1))  # (tb, 2)

    # Target pick: one compare + select over the fused tile.
    tgt_a = tgt_ref[:, 0:1]
    tgt_o = tgt_ref[:, 1:2]
    tgt_lane = jnp.where(is_act, tgt_a, tgt_o + a_cls)        # (tb, tot)
    hit = jnp.where(lane == tgt_lane, logits, 0.0)
    picked_a = jnp.sum(jnp.where(is_act, hit, 0.0), axis=-1, keepdims=True)
    picked_o = jnp.sum(jnp.where(is_act, 0.0, hit), axis=-1, keepdims=True)

    ms = jnp.concatenate([m_a, m_o], axis=-1)                 # (tb, 2)
    picks = jnp.concatenate([picked_a, picked_o], axis=-1)    # (tb, 2)
    per_row = ms + logs - picks                               # (tb, 2) = [CE_a, CE_o]

    if need_mask:
        # Rows of ragged / clamped-duplicate blocks are excluded BEFORE the
        # cross-row reduction so padded garbage (NaN/Inf) cannot leak in.
        global_blk = c * blocks_per_slice + i
        row = jax.lax.broadcasted_iota(jnp.int32, (tb, 1), 0) + global_blk * tb
        per_row = jnp.where(row < batch_size, per_row, 0.0)

    # ONE cross-sublane reduction; accumulate as a (1, 2) vector.
    out_ref[...] += jnp.sum(per_row, axis=0, keepdims=True)


def fused_cross_entropy_means(action_hat, object_hat, obj_mask,
                              action_tgt, object_tgt, *, block_rows=1024):
    """Returns (action_loss, object_loss), each mean CE over the batch."""
    B, A = action_hat.shape
    _, O = object_hat.shape

    tb = B if B <= block_rows else block_rows
    nblocks = pl.cdiv(B, tb)
    n_par = min(2, nblocks)            # leading parallel axis: both TCs on v7x
    bpc = pl.cdiv(nblocks, n_par)      # blocks per parallel slice
    last_blk = nblocks - 1
    # Mask needed if the grid over-covers the true batch (ragged last block or
    # clamped duplicate blocks when nblocks is odd).
    need_mask = (n_par * bpc * tb) != B

    targets = jnp.stack([action_tgt.astype(jnp.int32),
                         object_tgt.astype(jnp.int32)], axis=-1)   # (B, 2)
    mask_i8 = obj_mask.astype(jnp.int8)     # 1 byte/elem mask traffic

    def blk_map(c, i):
        # Clamp so out-of-range duplicate blocks stay in bounds; their rows are
        # masked out of the sum inside the kernel.
        return (jnp.minimum(c * bpc + i, last_blk), 0)

    kernel = functools.partial(_fused_ce_kernel, batch_size=B,
                               blocks_per_slice=bpc, need_mask=need_mask)

    cost = pl.CostEstimate(
        flops=6 * B * (A + O),
        transcendentals=B * (A + O + 2),
        bytes_accessed=B * (4 * A + 5 * O + 8) + n_par * 8,
    )

    partial_sums = pl.pallas_call(
        kernel,
        out_shape=jax.ShapeDtypeStruct((n_par, 1, 2), jnp.float32),
        grid=(n_par, bpc),
        in_specs=[
            pl.BlockSpec((tb, A), blk_map),
            pl.BlockSpec((tb, O), blk_map),
            pl.BlockSpec((tb, O), blk_map),
            pl.BlockSpec((tb, 2), blk_map),
        ],
        out_specs=pl.BlockSpec((None, 1, 2), lambda c, i: (c, 0, 0)),
        compiler_params=pltpu.CompilerParams(
            # Leading axis is megacore-parallel (per-slice partial outputs);
            # trailing axis accumulates into the resident block -> reduction.
            dimension_semantics=("parallel", "arbitrary")),
        cost_estimate=cost,
    )(action_hat, object_hat, mask_i8, targets)

    totals = jnp.sum(partial_sums, axis=(0, 1)) / jnp.float32(B)   # (2,)
    return totals[0], totals[1]


@dataclasses.dataclass
class GRIDConfig:
    action_loss_scale: float = 1.0
    object_loss_scale: float = 0.5
    enable_l1: bool = True
    enable_l2: bool = True
    weight_decay: float = 1e-4
    l1_param: float = 0.01
    l2_param: float = 0.01


def grid_loss(config, action_hat, object_hat, obj_mask, action, object_tgt):
    """Forward of GRIDLoss. Returns (loss, action_loss, object_loss)."""
    action_loss, object_loss = fused_cross_entropy_means(
        action_hat, object_hat, obj_mask, action, object_tgt)

    loss = (config.action_loss_scale * action_loss
            + config.object_loss_scale * object_loss)

    # GRIDLoss has no parameters -> L1/L2 regularization terms are exactly 0.
    if config.enable_l2:
        loss = loss + config.l2_param * (jnp.float32(0.0) * config.weight_decay)
    if config.enable_l1:
        loss = loss + config.l1_param * (jnp.float32(0.0) * config.weight_decay)

    return loss, action_loss, object_loss


def _ce_mean_ref(logits, targets):
    logp = jax.nn.log_softmax(logits.astype(jnp.float32), axis=-1)
    picked = jnp.take_along_axis(logp, targets.reshape(-1, 1), axis=-1)
    return -jnp.mean(picked)


if __name__ == "__main__":
    key = jax.random.PRNGKey(0)
    k1, k2, k3, k4, k5 = jax.random.split(key, 5)

    B = 8          # batch
    A_CLS = 16     # number of action classes
    O_CLS = 32     # number of object classes

    action_hat = jax.random.normal(k1, (B, A_CLS), dtype=jnp.float32)
    object_hat = jax.random.normal(k2, (B, O_CLS), dtype=jnp.float32)
    obj_mask = jax.random.bernoulli(k3, p=0.25, shape=(B, O_CLS))
    action = jax.random.randint(k4, (B,), 0, A_CLS, dtype=jnp.int32)
    object_tgt = jax.random.randint(k5, (B,), 0, O_CLS, dtype=jnp.int32)

    cfg = GRIDConfig()
    loss, action_loss, object_loss = grid_loss(
        cfg, action_hat, object_hat, obj_mask, action, object_tgt)
    jax.block_until_ready((loss, action_loss, object_loss))

    # Pure-JAX reference check (same semantics as the PyTorch module).
    ref_a = _ce_mean_ref(action_hat, action)
    ref_o = _ce_mean_ref(object_hat * (~obj_mask), object_tgt)
    ref_loss = cfg.action_loss_scale * ref_a + cfg.object_loss_scale * ref_o
    assert jnp.allclose(action_loss, ref_a, rtol=1e-4, atol=1e-5)
    assert jnp.allclose(object_loss, ref_o, rtol=1e-4, atol=1e-5)
    assert jnp.allclose(loss, ref_loss, rtol=1e-4, atol=1e-5)

    # Second check: exercises the multi-block, dual-slice (parallel axis),
    # ragged-last-block and clamped-duplicate-block paths.
    B2 = 20
    a2 = jax.random.normal(k1, (B2, A_CLS), dtype=jnp.float32)
    o2 = jax.random.normal(k2, (B2, O_CLS), dtype=jnp.float32)
    m2 = jax.random.bernoulli(k3, p=0.25, shape=(B2, O_CLS))
    at2 = jax.random.randint(k4, (B2,), 0, A_CLS, dtype=jnp.int32)
    ot2 = jax.random.randint(k5, (B2,), 0, O_CLS, dtype=jnp.int32)
    al2, ol2 = fused_cross_entropy_means(a2, o2, m2, at2, ot2, block_rows=8)
    jax.block_until_ready((al2, ol2))
    assert jnp.allclose(al2, _ce_mean_ref(a2, at2), rtol=1e-4, atol=1e-5)
    assert jnp.allclose(ol2, _ce_mean_ref(o2 * (~m2), ot2), rtol=1e-4, atol=1e-5)

    print("KERNEL_OK")
</pallas_src>

<mosaic_0001>
module attributes {stable_mosaic.version = 11 : i64} {
  func.func @_fused_ce_kernel(%arg0: i32, %arg1: i32, %arg2: memref<8x16xf32, #tpu.memory_space<vmem>>, %arg3: memref<8x32xf32, #tpu.memory_space<vmem>>, %arg4: memref<8x32xi8, #tpu.memory_space<vmem>>, %arg5: memref<8x2xi32, #tpu.memory_space<vmem>>, %arg6: memref<1x1x2xf32, #tpu.memory_space<vmem>>) attributes {dimension_semantics = [#tpu.dimension_semantics<parallel>, #tpu.dimension_semantics<arbitrary>], iteration_bounds = array<i64: 1, 1>, scalar_prefetch = 0 : i64, scratch_operands = 0 : i64, tpu.core_type = #tpu.core_type<tc>, window_params = [{transform_indices = @transform_0, window_bounds = array<i64: 8, 16>}, {transform_indices = @transform_1, window_bounds = array<i64: 8, 32>}, {transform_indices = @transform_2, window_bounds = array<i64: 8, 32>}, {transform_indices = @transform_3, window_bounds = array<i64: 8, 2>}, {transform_indices = @transform_4, window_bounds = array<i64: 1, 1, 2>}]} {
    %c0_i32 = arith.constant 0 : i32
    %0 = arith.cmpi eq, %arg1, %c0_i32 : i32
    %1 = arith.extui %0 : i1 to i32
    %c0_i32_0 = arith.constant 0 : i32
    %2 = arith.cmpi ne, %1, %c0_i32_0 : i32
    scf.if %2 {
      %cst_28 = arith.constant 0.000000e+00 : f32
      %67 = vector.broadcast %cst_28 : f32 to vector<1x2xf32>
      %c0_29 = arith.constant 0 : index
      %c0_30 = arith.constant 0 : index
      %c0_31 = arith.constant 0 : index
      %68 = vector.load %arg6[%c0_29, %c0_30, %c0_31] : memref<1x1x2xf32, #tpu.memory_space<vmem>>, vector<1x1x2xf32>
      %69 = vector.shape_cast %68 : vector<1x1x2xf32> to vector<1x2xf32>
      %70 = vector.shape_cast %67 : vector<1x2xf32> to vector<1x1x2xf32>
      tpu.vector_store %arg6[%c0_29, %c0_30, %c0_31], %70 {strides = array<i32>} : memref<1x1x2xf32, #tpu.memory_space<vmem>>, vector<1x1x2xf32>,
    } else {
    }
    %c0 = arith.constant 0 : index
    %c0_1 = arith.constant 0 : index
    %3 = vector.load %arg2[%c0, %c0_1] : memref<8x16xf32, #tpu.memory_space<vmem>>, vector<8x16xf32>
    %c0_2 = arith.constant 0 : index
    %c0_3 = arith.constant 0 : index
    %4 = vector.load %arg4[%c0_2, %c0_3] : memref<8x32xi8, #tpu.memory_space<vmem>>, vector<8x32xi8>
    %c0_i8 = arith.constant 0 : i8
    %5 = vector.broadcast %c0_i8 : i8 to vector<8x32xi8>
    %6 = arith.cmpi ne, %4, %5 : vector<8x32xi8>
    %c0_4 = arith.constant 0 : index
    %c0_5 = arith.constant 0 : index
    %7 = vector.load %arg3[%c0_4, %c0_5] : memref<8x32xf32, #tpu.memory_space<vmem>>, vector<8x32xf32>
    %cst = arith.constant 0.000000e+00 : f32
    %8 = vector.broadcast %cst : f32 to vector<8x32xf32>
    %9 = arith.select %6, %8, %7 : vector<8x32xi1>, vector<8x32xf32>
    %10 = tpu.concatenate %3, %9 in 1 : vector<8x16xf32>, vector<8x32xf32> -> vector<8x48xf32>
    %11 = tpu.iota {dimensions = array<i32: 1>} : vector<8x48xi32>
    %c16_i32 = arith.constant 16 : i32
    %12 = vector.broadcast %c16_i32 : i32 to vector<8x48xi32>
    %13 = arith.cmpi slt, %11, %12 : vector<8x48xi32>
    %cst_6 = arith.constant dense<0xFF800000> : vector<8xf32>
    %14 = vector.multi_reduction <maximumf>, %3, %cst_6 [1] : vector<8x16xf32> to vector<8xf32>
    %15 = vector.shape_cast %14 : vector<8xf32> to vector<8x1xf32>
    %cst_7 = arith.constant dense<0xFF800000> : vector<8xf32>
    %16 = vector.multi_reduction <maximumf>, %9, %cst_7 [1] : vector<8x32xf32> to vector<8xf32>
    %17 = vector.shape_cast %16 : vector<8xf32> to vector<8x1xf32>
    %18 = vector.shape_cast %15 : vector<8x1xf32> to vector<8x1xf32>
    %19 = vector.broadcast %18 : vector<8x1xf32> to vector<8x48xf32>
    %20 = vector.shape_cast %17 : vector<8x1xf32> to vector<8x1xf32>
    %21 = vector.broadcast %20 : vector<8x1xf32> to vector<8x48xf32>
    %22 = arith.select %13, %19, %21 : vector<8x48xi1>, vector<8x48xf32>
    %23 = arith.subf %10, %22 : vector<8x48xf32>
    %24 = math.exp %23 : vector<8x48xf32>
    %cst_8 = arith.constant 0.000000e+00 : f32
    %25 = vector.broadcast %cst_8 : f32 to vector<8x48xf32>
    %26 = arith.select %13, %24, %25 : vector<8x48xi1>, vector<8x48xf32>
    %cst_9 = arith.constant dense<0.000000e+00> : vector<8xf32>
    %27 = vector.multi_reduction <add>, %26, %cst_9 [1] : vector<8x48xf32> to vector<8xf32>
    %28 = vector.shape_cast %27 : vector<8xf32> to vector<8x1xf32>
    %cst_10 = arith.constant 0.000000e+00 : f32
    %29 = vector.broadcast %cst_10 : f32 to vector<8x48xf32>
    %30 = arith.select %13, %29, %24 : vector<8x48xi1>, vector<8x48xf32>
    %cst_11 = arith.constant dense<0.000000e+00> : vector<8xf32>
    %31 = vector.multi_reduction <add>, %30, %cst_11 [1] : vector<8x48xf32> to vector<8xf32>
    %32 = vector.shape_cast %31 : vector<8xf32> to vector<8x1xf32>
    %33 = tpu.concatenate %28, %32 in 1 : vector<8x1xf32>, vector<8x1xf32> -> vector<8x2xf32>
    %34 = math.log %33 : vector<8x2xf32>
    %c0_12 = arith.constant 0 : index
    %c0_13 = arith.constant 0 : index
    %35 = vector.load %arg5[%c0_12, %c0_13] : memref<8x2xi32, #tpu.memory_space<vmem>>, vector<8x1xi32>
    %c0_14 = arith.constant 0 : index
    %c1 = arith.constant 1 : index
    %36 = vector.load %arg5[%c0_14, %c1] : memref<8x2xi32, #tpu.memory_space<vmem>>, vector<8x1xi32>
    %c16_i32_15 = arith.constant 16 : i32
    %37 = vector.broadcast %c16_i32_15 : i32 to vector<8x1xi32>
    %38 = arith.addi %36, %37 : vector<8x1xi32>
    %39 = vector.shape_cast %35 : vector<8x1xi32> to vector<8x1xi32>
    %40 = vector.broadcast %39 : vector<8x1xi32> to vector<8x48xi32>
    %41 = vector.shape_cast %38 : vector<8x1xi32> to vector<8x1xi32>
    %42 = vector.broadcast %41 : vector<8x1xi32> to vector<8x48xi32>
    %43 = arith.select %13, %40, %42 : vector<8x48xi1>, vector<8x48xi32>
    %44 = arith.cmpi eq, %11, %43 : vector<8x48xi32>
    %cst_16 = arith.constant 0.000000e+00 : f32
    %45 = vector.broadcast %cst_16 : f32 to vector<8x48xf32>
    %46 = arith.select %44, %10, %45 : vector<8x48xi1>, vector<8x48xf32>
    %cst_17 = arith.constant 0.000000e+00 : f32
    %47 = vector.broadcast %cst_17 : f32 to vector<8x48xf32>
    %48 = arith.select %13, %46, %47 : vector<8x48xi1>, vector<8x48xf32>
    %cst_18 = arith.constant dense<0.000000e+00> : vector<8xf32>
    %49 = vector.multi_reduction <add>, %48, %cst_18 [1] : vector<8x48xf32> to vector<8xf32>
    %50 = vector.shape_cast %49 : vector<8xf32> to vector<8x1xf32>
    %cst_19 = arith.constant 0.000000e+00 : f32
    %51 = vector.broadcast %cst_19 : f32 to vector<8x48xf32>
    %52 = arith.select %13, %51, %46 : vector<8x48xi1>, vector<8x48xf32>
    %cst_20 = arith.constant dense<0.000000e+00> : vector<8xf32>
    %53 = vector.multi_reduction <add>, %52, %cst_20 [1] : vector<8x48xf32> to vector<8xf32>
    %54 = vector.shape_cast %53 : vector<8xf32> to vector<8x1xf32>
    %55 = tpu.concatenate %15, %17 in 1 : vector<8x1xf32>, vector<8x1xf32> -> vector<8x2xf32>
    %56 = tpu.concatenate %50, %54 in 1 : vector<8x1xf32>, vector<8x1xf32> -> vector<8x2xf32>
    %57 = arith.addf %55, %34 : vector<8x2xf32>
    %58 = arith.subf %57, %56 : vector<8x2xf32>
    %c0_21 = arith.constant 0 : index
    %c0_22 = arith.constant 0 : index
    %c0_23 = arith.constant 0 : index
    %59 = vector.load %arg6[%c0_21, %c0_22, %c0_23] : memref<1x1x2xf32, #tpu.memory_space<vmem>>, vector<1x1x2xf32>
    %60 = vector.shape_cast %59 : vector<1x1x2xf32> to vector<1x2xf32>
    %cst_24 = arith.constant dense<0.000000e+00> : vector<2xf32>
    %61 = vector.multi_reduction <add>, %58, %cst_24 [0] : vector<8x2xf32> to vector<2xf32>
    %62 = vector.shape_cast %61 : vector<2xf32> to vector<1x2xf32>
    %63 = arith.addf %60, %62 : vector<1x2xf32>
    %c0_25 = arith.constant 0 : index
    %c0_26 = arith.constant 0 : index
    %c0_27 = arith.constant 0 : index
    %64 = vector.load %arg6[%c0_25, %c0_26, %c0_27] : memref<1x1x2xf32, #tpu.memory_space<vmem>>, vector<1x1x2xf32>
    %65 = vector.shape_cast %64 : vector<1x1x2xf32> to vector<1x2xf32>
    %66 = vector.shape_cast %63 : vector<1x2xf32> to vector<1x1x2xf32>
    tpu.vector_store %arg6[%c0_25, %c0_26, %c0_27], %66 {strides = array<i32>} : memref<1x1x2xf32, #tpu.memory_space<vmem>>, vector<1x1x2xf32>,
    return
  }
  func.func @transform_0(%arg0: i32, %arg1: i32) -> (i32, i32) {
    %c1_i32 = arith.constant 1 : i32
    %0 = arith.muli %arg0, %c1_i32 : i32
    %1 = arith.addi %0, %arg1 : i32
    %c0_i32 = arith.constant 0 : i32
    %2 = arith.minsi %1, %c0_i32 : i32
    %c0_i32_0 = arith.constant 0 : i32
    %c0_i32_1 = arith.constant 0 : i32
    return %2, %c0_i32_0 : i32, i32
  }
  func.func @transform_1(%arg0: i32, %arg1: i32) -> (i32, i32) {
    %c1_i32 = arith.constant 1 : i32
    %0 = arith.muli %arg0, %c1_i32 : i32
    %1 = arith.addi %0, %arg1 : i32
    %c0_i32 = arith.constant 0 : i32
    %2 = arith.minsi %1, %c0_i32 : i32
    %c0_i32_0 = arith.constant 0 : i32
    %c0_i32_1 = arith.constant 0 : i32
    return %2, %c0_i32_0 : i32, i32
  }
  func.func @transform_2(%arg0: i32, %arg1: i32) -> (i32, i32) {
    %c1_i32 = arith.constant 1 : i32
    %0 = arith.muli %arg0, %c1_i32 : i32
    %1 = arith.addi %0, %arg1 : i32
    %c0_i32 = arith.constant 0 : i32
    %2 = arith.minsi %1, %c0_i32 : i32
    %c0_i32_0 = arith.constant 0 : i32
    %c0_i32_1 = arith.constant 0 : i32
    return %2, %c0_i32_0 : i32, i32
  }
  func.func @transform_3(%arg0: i32, %arg1: i32) -> (i32, i32) {
    %c1_i32 = arith.constant 1 : i32
    %0 = arith.muli %arg0, %c1_i32 : i32
    %1 = arith.addi %0, %arg1 : i32
    %c0_i32 = arith.constant 0 : i32
    %2 = arith.minsi %1, %c0_i32 : i32
    %c0_i32_0 = arith.constant 0 : i32
    %c0_i32_1 = arith.constant 0 : i32
    return %2, %c0_i32_0 : i32, i32
  }
  func.func @transform_4(%arg0: i32, %arg1: i32) -> (i32, i32, i32) {
    %c0_i32 = arith.constant 0 : i32
    %c0_i32_0 = arith.constant 0 : i32
    %c0_i32_1 = arith.constant 0 : i32
    return %arg0, %c0_i32, %c0_i32_0 : i32, i32, i32
  }
}

</mosaic_0001>

<llo_original>
// kernel: tpu_custom_call.1
$region0: #{tpu_custom_call.1}
  #allocation0 [shape = 'u32[]', space=smem, size = 0x4, offset = 0x4, fixed_abs, tag = 'smem constant byte address 0x4 - core index']
  #allocation1 [shape = 'u32[144,128]{1,0:T(1,128)}', space=vmem, size = 0x12000, scoped, tag = 'internal scratch']
  %s0 = inlined_call_operand.vmem [shape: f32[8,16], index: 0, kind: input, shape index: {}]
  %s1 = inlined_call_operand.hbm [shape: f32[8,32], index: 1, kind: input, shape index: {}]
  %s2 = inlined_call_operand.vmem [shape: s8[8,32], index: 2, kind: input, shape index: {}]
  %s3 = inlined_call_operand.vmem [shape: s32[8,2], index: 3, kind: input, shape index: {}]
  %s4 = inlined_call_operand.hbm [shape: f32[1,1,2], index: 4, kind: output, shape index: {}]
  %s5 = sld [smem:[#allocation0]]
  $region34: #{tpu_custom_call.1} parent=0
    _
  %s7 = ssub.s32 1, %s5
  %s8 = scalar_select 0, %s7, %s5
  $region1: #{tpu_custom_call.1} parent=0
    #allocation2 [shape = 'u8[4096]{0}', space=vmem, size = 0x1000, scoped, tag = 'input window, operand 1, single buffered']
    #allocation3 [shape = 's32[1]{0}', space=sflag, size = 0x4, scoped, tag = 'scoped memory for tpu_custom_call.1']
    #allocation4 [shape = 's32[1]{0}', space=sflag, size = 0x4, scoped, tag = 'scoped memory for tpu_custom_call.1']
    #allocation5 [shape = 'u8[512]{0}', space=vmem, size = 0x400, scoped, tag = 'output window, operand 0, single buffered']
    %9 = vsyncpa [#allocation3], 0
    %10 = vsyncpa [#allocation4], 0
    // Predicated region
    $region2: #{tpu_custom_call.1} parent=1 // pred_check
      _
    $region3: #{tpu_custom_call.1} parent=1 // pred_check_branch
      %12 = sbr.rel (0) target = $region5
    $region4: #{tpu_custom_call.1} parent=1 // pred_region
      %s13 = sadd.s32 0, 0
      %p14 = scmp.lt.s32.totalorder %s13, 0
      %s15 = scalar_select %p14, %s13, 0
      %p16 = scmp.lt.s32.totalorder %s15, 0
      %s17 = scalar_select %p16, %s15, 0
      %s18 = smul.addr %s17, 8
      %s19 = scalar_lea.vmem %s0, %s18
      %s20 = sadd.s32 0, 0
      %p21 = scmp.lt.s32.totalorder %s20, 0
      %s22 = scalar_select %p21, %s20, 0
    $region5: #{tpu_custom_call.1} parent=1 // pred_fallthru
      _
    // Predicated region
    $region6: #{tpu_custom_call.1} parent=1 // pred_check
      _
    $region7: #{tpu_custom_call.1} parent=1 // pred_check_branch
      %24 = sbr.rel (0) target = $region9
    $region8: #{tpu_custom_call.1} parent=1 // pred_region
      %s25 = sadd.s32 0, 0
      %p26 = scmp.lt.s32.totalorder %s25, 0
      %s27 = scalar_select %p26, %s25, 0
      %s29 = ssub.s32 128, 128
      %30 = vsyncadd [#allocation3], %s29
      %s31 = smul.addr %s27, 128
      %s32 = scalar_lea.hbm %s1, %s31
      %s34 = sshll.u32 [#allocation2], 4
      %s35 = int_to_ptr.vmem [resolvable:$true] %s34
      %37 = dma.hbm_to_vmem [thread:$0]  %s32, 128, %s35, [#allocation3]
    $region9: #{tpu_custom_call.1} parent=1 // pred_fallthru
      _
    // Predicated region
    $region10: #{tpu_custom_call.1} parent=1 // pred_check
      _
    $region11: #{tpu_custom_call.1} parent=1 // pred_check_branch
      %39 = sbr.rel (0) target = $region13
    $region12: #{tpu_custom_call.1} parent=1 // pred_region
      %s40 = sadd.s32 0, 0
      %p41 = scmp.lt.s32.totalorder %s40, 0
      %s42 = scalar_select %p41, %s40, 0
      %p43 = scmp.lt.s32.totalorder %s42, 0
      %s44 = scalar_select %p43, %s42, 0
      %s45 = smul.addr %s44, 2
      %s46 = scalar_lea.vmem %s2, %s45
      %s47 = sadd.s32 0, 0
      %p48 = scmp.lt.s32.totalorder %s47, 0
      %s49 = scalar_select %p48, %s47, 0
    $region13: #{tpu_custom_call.1} parent=1 // pred_fallthru
      _
    // Predicated region
    $region14: #{tpu_custom_call.1} parent=1 // pred_check
      _
    $region15: #{tpu_custom_call.1} parent=1 // pred_check_branch
      %51 = sbr.rel (0) target = $region17
    $region16: #{tpu_custom_call.1} parent=1 // pred_region
      %s52 = sadd.s32 0, 0
      %p53 = scmp.lt.s32.totalorder %s52, 0
      %s54 = scalar_select %p53, %s52, 0
      %p55 = scmp.lt.s32.totalorder %s54, 0
      %s56 = scalar_select %p55, %s54, 0
      %s57 = smul.addr %s56, 8
      %s58 = scalar_lea.vmem %s3, %s57
      %s59 = sadd.s32 0, 0
      %p60 = scmp.lt.s32.totalorder %s59, 0
      %s61 = scalar_select %p60, %s59, 0
    $region17: #{tpu_custom_call.1} parent=1 // pred_fallthru
      _
    // Predicated region
    $region18: #{tpu_custom_call.1} parent=1 // pred_check
      _
    $region19: #{tpu_custom_call.1} parent=1 // pred_check_branch
      %63 = sbr.rel (0) target = $region21
    $region20: #{tpu_custom_call.1} parent=1 // pred_region
      %64 = dma.done [#allocation3], 128
    $region21: #{tpu_custom_call.1} parent=1 // pred_fallthru
      _
    %s65 = sadd.s32 0, 0
    %p66 = scmp.lt.s32.totalorder %s65, 0
    %s67 = scalar_select %p66, %s65, 0
    %p68 = scmp.lt.s32.totalorder %s67, 0
    %s69 = scalar_select %p68, %s67, 0
    %s70 = smul.addr %s69, 8
    %s71 = scalar_lea.vmem %s0, %s70
    %s72 = sadd.s32 0, 0
    %p73 = scmp.lt.s32.totalorder %s72, 0
    %s74 = scalar_select %p73, %s72, 0
    %p75 = scmp.lt.s32.totalorder %s74, 0
    %s76 = scalar_select %p75, %s74, 0
    %s77 = smul.addr %s76, 2
    %s78 = scalar_lea.vmem %s2, %s77
    %s79 = sadd.s32 0, 0
    %p80 = scmp.lt.s32.totalorder %s79, 0
    %s81 = scalar_select %p80, %s79, 0
    %p82 = scmp.lt.s32.totalorder %s81, 0
    %s83 = scalar_select %p82, %s81, 0
    %s84 = smul.addr %s83, 8
    %s85 = scalar_lea.vmem %s3, %s84
    %s86 = sadd.s32 0, 0
    %p87 = scmp.lt.s32.totalorder %s86, 0
    %s88 = scalar_select %p87, %s86, 0
    %p89 = scmp.lt.s32.totalorder %s88, 0
    %s90 = scalar_select %p89, %s88, 0
    %s91 = smul.addr %s90, 8
    %s92 = scalar_lea.vmem %s0, %s91
    %s93 = sadd.s32 0, 0
    %p94 = scmp.lt.s32.totalorder %s93, 0
    %s95 = scalar_select %p94, %s93, 0
    %s96 = sadd.s32 0, 0
    %p97 = scmp.lt.s32.totalorder %s96, 0
    %s98 = scalar_select %p97, %s96, 0
    %s99 = sadd.s32 0, 0
    %p100 = scmp.lt.s32.totalorder %s99, 0
    %s101 = scalar_select %p100, %s99, 0
    %p102 = scmp.lt.s32.totalorder %s101, 0
    %s103 = scalar_select %p102, %s101, 0
    %s104 = smul.addr %s103, 2
    %s105 = scalar_lea.vmem %s2, %s104
    %s106 = sadd.s32 0, 0
    %p107 = scmp.lt.s32.totalorder %s106, 0
    %s108 = scalar_select %p107, %s106, 0
    %s109 = sadd.s32 0, 0
    %p110 = scmp.lt.s32.totalorder %s109, 0
    %s111 = scalar_select %p110, %s109, 0
    %p112 = scmp.lt.s32.totalorder %s111, 0
    %s113 = scalar_select %p112, %s111, 0
    %s114 = smul.addr %s113, 8
    %s115 = scalar_lea.vmem %s3, %s114
    %s116 = sadd.s32 0, 0
    %p117 = scmp.lt.s32.totalorder %s116, 0
    %s118 = scalar_select %p117, %s116, 0
    %p121 = scmp.eq.s32.totalorder 0, 0
    // Predicated region
    $region22: #{tpu_custom_call.1} parent=1 // pred_check
      %p122 = pneg %p121
    $region23: #{tpu_custom_call.1} parent=1 // pred_check_branch
      %124 = sbr.rel (%p122) target = $region25
    $region24: #{tpu_custom_call.1} parent=1 // pred_region
      %vm125 = vcmask 8192
      %126 = vst.msk [vmem:[#allocation5] sm:$0x1] %vm125, 0.0
    $region25: #{tpu_custom_call.1} parent=1 // pred_fallthru
      _
    %v127 = vld [vmem:[%s92] sm:$0xff]
    %v128 = vld [vmem:[%s105] sm:$0x3]
    %vm129 = vnez %v128
    %v130 = vld [vmem:[#allocation2] sm:$0xff]
    %v131 = vsel %vm129, 16843009, 0
    %v132 = vunpack.c.0.s8 %v131
    %vm133 = vcmp.ne.s32.totalorder %v132, 0
    %v134 = vsel %vm133, 0.0, %v130
    %136 = vrot.lane.b32.xlu0 %v134, 16
    %v137 = vpop.permute.xlu0 %136
    %vm139 = vcmask 130048
    %v140 = vsel %vm139, %v127, %v137
    %v141 = vlaneseq
    %v142 = vand.u32 %v141, 127
    %vm143 = vcmp.lt.s32.totalorder %v142, 16
    %v144 = vsel %vm139, %v127, -inf
    %145 = vmax.xlane.f32.xlu0 %v144
    %v146 = vpop.xlane.xlu0 %145
    %vm147 = vcmask 261120
    %v148 = vsel %vm147, %v134, -inf
    %149 = vmax.xlane.f32.xlu0 %v148
    %v150 = vpop.xlane.xlu0 %149
    %v151 = vsel %vm143, %v146, %v150
    %v152 = vsub.f32 %v140, %v151
    %v153 = vmul.f32 %v152, 1.442695
    %v154 = vpow.pop %v153
    %v155 = vsel %vm143, %v154, 0.0
    %vm156 = vcmask 392192
    %v157 = vsel %vm156, %v155, 0.0
    %158 = vadd.xlane.f32.xlu0 %v157
    %v159 = vpop.xlane.xlu0 %158
    %v160 = vsel %vm143, 0.0, %v154
    %v161 = vsel %vm156, %v160, 0.0
    %162 = vadd.xlane.f32.xlu0 %v161
    %v163 = vpop.xlane.xlu0 %162
    %vm164 = vcmask 7168
    %v165 = vsel %vm164, %v159, %v163
    %v166 = vlog2.pop %v165
    %v167 = vmul.f32 %v166, 0.6931472
    %v168 = vld [vmem:[%s115] sm:$0xff]
    %v169 = vadd.s32 %v168, 16
    %170 = vset.pattern.permute.xlu0 0
    %171 = vperm.xlu0 %170, %v168
    %v172 = vpop.permute.xlu0 %171
    %173 = vset.pattern.permute.xlu0 1
    %174 = vperm.xlu0 %173, %v169
    %v175 = vpop.permute.xlu0 %174
    %v176 = vsel %vm143, %v172, %v175
    %vm177 = vcmp.eq.s32.totalorder %v142, %v176
    %v178 = vsel %vm177, %v140, 0.0
    %v179 = vsel %vm143, %v178, 0.0
    %v180 = vsel %vm156, %v179, 0.0
    %181 = vadd.xlane.f32.xlu0 %v180
    %v182 = vpop.xlane.xlu0 %181
    %v183 = vsel %vm143, 0.0, %v178
    %v184 = vsel %vm156, %v183, 0.0
    %185 = vadd.xlane.f32.xlu0 %v184
    %v186 = vpop.xlane.xlu0 %185
    %v187 = vsel %vm164, %v146, %v150
    %v188 = vsel %vm164, %v182, %v186
    %v189 = vadd.f32 %v187, %v167
    %v190 = vsub.f32 %v189, %v188
    %v191 = vld [vmem:[#allocation5] sm:$0x1]
    %vm192 = vcmask 15360
    %v193 = vsel %vm192, %v190, 0.0
    %v194 = vrot.slane %v193, 4
    %v195 = vadd.f32 %v193, %v194
    %v196 = vrot.slane %v195, 2
    %v197 = vadd.f32 %v195, %v196
    %v198 = vrot.slane %v197, 1
    %v199 = vadd.f32 %v197, %v198
    %v200 = vadd.f32 %v191, %v199
    %vm201 = vcmask 8192
    %202 = vst.msk [vmem:[#allocation5] sm:$0x1] %vm201, %v200
    // Predicated region
    $region26: #{tpu_custom_call.1} parent=1 // pred_check
      _
    $region27: #{tpu_custom_call.1} parent=1 // pred_check_branch
      %204 = sbr.rel (0) target = $region29
    $region28: #{tpu_custom_call.1} parent=1 // pred_region
      %s206 = ssub.s32 16, 16
      %207 = vsyncadd [#allocation4], %s206
      %s209 = sshll.u32 [#allocation5], 4
      %s210 = int_to_ptr.vmem [resolvable:$true] %s209
      %212 = dma.vmem_to_hbm [thread:$0]  %s210, 16, %s4, [#allocation4]
    $region29: #{tpu_custom_call.1} parent=1 // pred_fallthru
      _
    // Predicated region
    $region30: #{tpu_custom_call.1} parent=1 // pred_check
      _
    $region31: #{tpu_custom_call.1} parent=1 // pred_check_branch
      %214 = sbr.rel (0) target = $region33
    $region32: #{tpu_custom_call.1} parent=1 // pred_region
      %215 = dma.done [#allocation4], 16
    $region33: #{tpu_custom_call.1} parent=1 // pred_fallthru
      _
    %216 = vsyncpa [#allocation3], 1
    %217 = vsyncpa [#allocation4], 1

</llo_original>
